<compile_context>
chip_gen: v5e
topology: v5e:2x2
jax: 0.10.0
libtpu: 0.0.40
codegen_flags: <defaults>
</compile_context>

<pallas_src>
import functools

import jax
import jax.numpy as jnp
from jax.experimental import pallas as pl
from jax.experimental.pallas import tpu as pltpu

EPS = 1e-12  # F.normalize default eps
_VMEM_LIMIT = 64 * 1024 * 1024  # <= physical VMEM on every generation


def _l2_normalize(x, eps=EPS):
    nrm = jnp.sqrt(jnp.sum(x * x, axis=-1, keepdims=True))
    return x / jnp.maximum(nrm, eps)


# --------------------------------------------------------------------------------------
# Kernel A: tiled pooled similarity.  grid = (row tiles, column tiles of the pool).
# Per (i, j) tile it emits S/tau as bf16 (top_k ordering only) and accumulates the f32
# row sums of exp(S/tau) across the column axis (output-resident accumulator).
# --------------------------------------------------------------------------------------
def _sim_kernel(lhs_ref, rhs_ref, s_ref, rowsum_ref, *, inv_tau):
    j = pl.program_id(1)

    # bf16 operands -> MXU at full rate, f32 accumulation.  Contract feature dims directly
    # (no explicit transpose).  Scale by 1/tau in f32 after the matmul.
    s_scaled = jax.lax.dot_general(
        lhs_ref[...], rhs_ref[...], (((1,), (1,)), ((), ())),
        preferred_element_type=jnp.float32,
    ) * inv_tau                                            # [TM, TN] f32

    s_ref[...] = s_scaled.astype(s_ref.dtype)              # bf16, lane-dense store

    @pl.when(j == 0)
    def _():
        rowsum_ref[...] = jnp.zeros_like(rowsum_ref)
    # NOTE(v6e/v7x): for small D this exp is the binding EUP slot, not the MXU.
    rowsum_ref[...] += jnp.sum(jnp.exp(s_scaled), axis=-1, keepdims=True)


def similarity_pool(zn_pool_bf16, tau, *, tm=256, tn=512):
    m, d = zn_pool_bf16.shape
    tm = min(tm, m)
    tn = min(tn, m)
    assert m % tm == 0 and m % tn == 0, "2N must be divisible by both tiles"
    kernel = functools.partial(_sim_kernel, inv_tau=1.0 / float(tau))
    return pl.pallas_call(
        kernel,
        out_shape=(
            jax.ShapeDtypeStruct((m, m), jnp.bfloat16),    # S/tau (ordering only)
            jax.ShapeDtypeStruct((m, 1), jnp.float32),     # rowsum of exp(S/tau)
        ),
        grid=(m // tm, m // tn),
        in_specs=[
            pl.BlockSpec((tm, d), lambda i, j: (i, 0)),    # row tile of normalized pool (bf16)
            pl.BlockSpec((tn, d), lambda i, j: (j, 0)),    # column tile of normalized pool (bf16)
        ],
        out_specs=(
            pl.BlockSpec((tm, tn), lambda i, j: (i, j)),
            pl.BlockSpec((tm, 1), lambda i, j: (i, 0)),    # revisited across j -> resident acc
        ),
        compiler_params=pltpu.CompilerParams(
            dimension_semantics=("parallel", "arbitrary"),
            vmem_limit_bytes=_VMEM_LIMIT,
        ),
    )(zn_pool_bf16, zn_pool_bf16)


# --------------------------------------------------------------------------------------
# Kernel B: per block of TB query rows, gather+mix hard samples from the VMEM-resident
# PRE-PROJECTED pool, normalize (rsqrt), batched per-query row-dot (VPU), exp, reduce.
# Draw indices are DMA'd per block from HBM into a small SMEM scratch.
# --------------------------------------------------------------------------------------
def _mix_kernel(idx_hbm_ref, q_ref, pw_ref, out_ref, idx_smem, mix_ref, dma_sem,
                *, s, tb, mixup, inv_tau):
    i = pl.program_id(0)

    # Stage this block's (tb, 2s) draw-index table HBM -> SMEM (whole-table SMEM prefetch
    # would overflow scalar memory at the module defaults n, s=150).
    cp = pltpu.make_async_copy(idx_hbm_ref.at[pl.ds(i * tb, tb), :], idx_smem, dma_sem)
    cp.start()
    cp.wait()
    # TODO(synk): double-buffer this DMA (prefetch block i+1 while computing block i).

    # Phase 1: gather + mixup of PROJECTED hard samples.  Since the mix weights sum to 1,
    # proj(mixup*za + (1-mixup)*zb) == mixup*PWb[a] + (1-mixup)*PWb[b] (bias included in PWb),
    # so no per-step projection matmul is needed.
    # TODO(synk): replace the scalar-row loop with a vectorized jnp.take_along_axis / DMA gather
    #             once multi-vreg sublane dynamic_gather is available; scalar-indexed (1, D)
    #             copies are the guaranteed lowering today.
    def per_query(t, carry):
        def per_draw(jj, c):
            a = idx_smem[t, jj]
            b = idx_smem[t, s + jj]
            va = pw_ref[pl.ds(a, 1), :]
            vb = pw_ref[pl.ds(b, 1), :]
            mix_ref[t, pl.ds(jj, 1), :] = vb + mixup * (va - vb)   # fused mixup
            return c
        return jax.lax.fori_loop(0, s, per_draw, carry)

    jax.lax.fori_loop(0, tb, per_query, 0)

    # Phase 2: fully vectorized (VPU/XLU/EUP); no lane-poor [tb*s, tb] MXU matmul, no iota mask.
    hm = mix_ref[...]                                       # (tb, s, D) f32 (projected + bias)
    q = q_ref[...]                                          # (tb, D)    f32, pre-normalized
    ssq = jnp.sum(hm * hm, axis=-1, keepdims=True)          # (tb, s, 1)
    inv_nrm = jax.lax.rsqrt(jnp.maximum(ssq, EPS * EPS))    # == 1 / max(||h||, eps)
    dots = jnp.sum(hm * q[:, None, :], axis=-1, keepdims=True)     # (tb, s, 1)
    e = jnp.exp(dots * inv_nrm * inv_tau)                   # (tb, s, 1)
    out_ref[...] = jnp.sum(e, axis=1)                       # (tb, 1): tiny per-step store


def neg_mixing_sum(zn_q, pw_pool, draw_idx, *, s, mixup, tau, tb=32):
    n, d = zn_q.shape
    m = pw_pool.shape[0]
    tb = min(tb, n)
    assert n % tb == 0, "N must be divisible by the query block"
    assert draw_idx.shape == (n, 2 * s)

    kernel = functools.partial(
        _mix_kernel, s=int(s), tb=int(tb), mixup=float(mixup), inv_tau=1.0 / float(tau)
    )
    out = pl.pallas_call(
        kernel,
        out_shape=jax.ShapeDtypeStruct((n, 1), jnp.float32),
        grid=(n // tb,),
        in_specs=[
            pl.BlockSpec(memory_space=pl.ANY),              # draw_idx stays in HBM
            pl.BlockSpec((tb, d), lambda i: (i, 0)),        # normalized query rows
            pl.BlockSpec((m, d), lambda i: (0, 0),          # projected pool, VMEM-resident
                         pipeline_mode=pl.Buffered(1)),     # constant block -> single buffer
        ],
        out_specs=pl.BlockSpec((tb, 1), lambda i: (i, 0)),
        scratch_shapes=[
            pltpu.SMEM((tb, 2 * s), jnp.int32),             # staged index block
            pltpu.VMEM((tb, s, d), jnp.float32),            # mixed projected hard samples
            pltpu.SemaphoreType.DMA,
        ],
        compiler_params=pltpu.CompilerParams(
            dimension_semantics=("parallel",),
            vmem_limit_bytes=_VMEM_LIMIT,
        ),
    )(draw_idx, zn_q, pw_pool)
    return out[:, 0]


# --------------------------------------------------------------------------------------
# Forward pass (mirrors HardMixingLoss.forward)
# --------------------------------------------------------------------------------------
def hard_mixing_loss(z1, z2, proj_w, proj_b, key, *, threshold=0.1, s=150, mixup=0.2,
                     tau=0.5, tm=256, tn=512, tb=32):
    n, d = z1.shape
    thr = max(int(n * threshold), 1)

    z_pool = jnp.concatenate([z1, z2], axis=0)                  # [2N, D] raw
    zn_pool = _l2_normalize(z_pool)                             # normalize ONCE (f32)

    # Kernel A: S/tau (bf16, ordering only) + exp row-sums (f32, "neg" denominators).
    s_mat, rowsum = similarity_pool(zn_pool.astype(jnp.bfloat16), tau, tm=tm, tn=tn)

    zn1, zn2 = zn_pool[:n], zn_pool[n:]
    # pos / refl are O(N*D): computed exactly in f32 here instead of masking full [TM, 2N]
    # tiles inside kernel A.  refl is the RAW cosine self-diagonal, exactly as the reference
    # (it subtracts the raw diag, ~1.0 for normalized rows, from the exp-sum denominators).
    refl1 = jnp.sum(zn1 * zn1, axis=-1)
    refl2 = jnp.sum(zn2 * zn2, axis=-1)
    pos = jnp.exp(jnp.sum(zn1 * zn2, axis=-1) / tau)
    neg1 = rowsum[:n, 0]
    neg2 = rowsum[n:, 0]

    # top-thr hard-negative pool-row indices; ordering invariant under the monotone 1/tau scale.
    _, top1 = jax.lax.top_k(s_mat[:n, :], thr)
    _, top2 = jax.lax.top_k(s_mat[n:, :], thr)

    # random hard-sample draws (deterministic via explicit PRNG key) -- JAX glue
    k1, k2 = jax.random.split(key)
    idx1 = jax.random.randint(k1, (n, 2 * s), 0, thr)
    idx2 = jax.random.randint(k2, (n, 2 * s), 0, thr)
    draw_idx1 = jnp.take_along_axis(top1, idx1, axis=1).astype(jnp.int32)
    draw_idx2 = jnp.take_along_axis(top2, idx2, axis=1).astype(jnp.int32)

    # Affine projection hoisted out of kernel B (mix weights sum to 1):
    #   proj(mixup*za + (1-mixup)*zb) == mixup*proj(za) + (1-mixup)*proj(zb)
    # One standard dense matmul -> leave to XLA.
    pw_pool = jnp.dot(z_pool, proj_w) + proj_b[None, :]         # [2N, D] f32

    neg_m1 = neg_mixing_sum(zn1, pw_pool, draw_idx1, s=s, mixup=mixup, tau=tau, tb=tb)
    neg_m2 = neg_mixing_sum(zn2, pw_pool, draw_idx2, s=s, mixup=mixup, tau=tau, tb=tb)

    loss1 = -jnp.log(pos / (neg1 + neg_m1 - refl1))
    loss2 = -jnp.log(pos / (neg2 + neg_m2 - refl2))
    loss = (loss1 + loss2) * 0.5
    return jnp.mean(loss)


if __name__ == "__main__":
    N, D = 128, 128  # num_samples, feature dim (128-lane aligned); 2N = 256 pool rows
    S_DRAW = 16      # `s` forward arg kept small for the demo (module default is 150)
    TAU = 0.5

    key = jax.random.PRNGKey(0)
    kz1, kz2, kw, kb, kidx = jax.random.split(key, 5)
    z1 = jax.random.normal(kz1, (N, D), jnp.float32)
    z2 = jax.random.normal(kz2, (N, D), jnp.float32)
    # deterministic projection parameters: Linear(D -> D), x @ W + b
    proj_w = jax.random.normal(kw, (D, D), jnp.float32) * (1.0 / jnp.sqrt(D))
    proj_b = jax.random.normal(kb, (D,), jnp.float32) * 0.01

    loss = hard_mixing_loss(
        z1, z2, proj_w, proj_b, kidx,
        threshold=0.1, s=S_DRAW, mixup=0.2, tau=TAU,
        tm=128, tn=128, tb=32,   # multi-step grids on BOTH axes of kernel A and on kernel B
    )
    loss = jax.block_until_ready(loss)
    assert jnp.isfinite(loss), f"loss is not finite: {loss}"
    print("KERNEL_OK")
</pallas_src>

<mosaic_0001>
module attributes {stable_mosaic.version = 11 : i64} {
  func.func @_sim_kernel(%arg0: i32, %arg1: i32, %arg2: memref<128x128xbf16, #tpu.memory_space<vmem>>, %arg3: memref<128x128xbf16, #tpu.memory_space<vmem>>, %arg4: memref<128x128xbf16, #tpu.memory_space<vmem>>, %arg5: memref<128x1xf32, #tpu.memory_space<vmem>>) attributes {dimension_semantics = [#tpu.dimension_semantics<parallel>, #tpu.dimension_semantics<arbitrary>], iteration_bounds = array<i64: 2, 2>, scalar_prefetch = 0 : i64, scratch_operands = 0 : i64, tpu.core_type = #tpu.core_type<tc>, window_params = [{transform_indices = @transform_0, window_bounds = array<i64: 128, 128>}, {transform_indices = @transform_1, window_bounds = array<i64: 128, 128>}, {transform_indices = @transform_2, window_bounds = array<i64: 128, 128>}, {transform_indices = @transform_3, window_bounds = array<i64: 128, 1>}]} {
    %c0 = arith.constant 0 : index
    %c0_0 = arith.constant 0 : index
    %0 = vector.load %arg2[%c0, %c0_0] : memref<128x128xbf16, #tpu.memory_space<vmem>>, vector<128x128xbf16>
    %c0_1 = arith.constant 0 : index
    %c0_2 = arith.constant 0 : index
    %1 = vector.load %arg3[%c0_1, %c0_2] : memref<128x128xbf16, #tpu.memory_space<vmem>>, vector<128x128xbf16>
    %cst = arith.constant dense<0.000000e+00> : vector<128x128xf32>
    %2 = tpu.matmul %0, %1, %cst {dimension_numbers = #tpu.dot_dimension_numbers<[1], [1], [0], [0], [0, 0, 1, 0], [], []>} : vector<128x128xbf16>, vector<128x128xbf16>, vector<128x128xf32> -> vector<128x128xf32>
    %cst_3 = arith.constant 2.000000e+00 : f32
    %3 = vector.broadcast %cst_3 : f32 to vector<128x128xf32>
    %4 = arith.mulf %2, %3 : vector<128x128xf32>
    %5 = arith.truncf %4 : vector<128x128xf32> to vector<128x128xbf16>
    %c0_4 = arith.constant 0 : index
    %c0_5 = arith.constant 0 : index
    %6 = vector.load %arg4[%c0_4, %c0_5] : memref<128x128xbf16, #tpu.memory_space<vmem>>, vector<128x128xbf16>
    tpu.vector_store %arg4[%c0_4, %c0_5], %5 {strides = array<i32>} : memref<128x128xbf16, #tpu.memory_space<vmem>>, vector<128x128xbf16>,
    %c0_i32 = arith.constant 0 : i32
    %7 = arith.cmpi eq, %arg1, %c0_i32 : i32
    %8 = arith.extui %7 : i1 to i32
    %c0_i32_6 = arith.constant 0 : i32
    %9 = arith.cmpi ne, %8, %c0_i32_6 : i32
    scf.if %9 {
      %cst_12 = arith.constant 0.000000e+00 : f32
      %16 = vector.broadcast %cst_12 : f32 to vector<128x1xf32>
      %c0_13 = arith.constant 0 : index
      %c0_14 = arith.constant 0 : index
      %17 = vector.load %arg5[%c0_13, %c0_14] : memref<128x1xf32, #tpu.memory_space<vmem>>, vector<128x1xf32>
      tpu.vector_store %arg5[%c0_13, %c0_14], %16 {strides = array<i32>} : memref<128x1xf32, #tpu.memory_space<vmem>>, vector<128x1xf32>,
    } else {
    }
    %c0_7 = arith.constant 0 : index
    %c0_8 = arith.constant 0 : index
    %10 = vector.load %arg5[%c0_7, %c0_8] : memref<128x1xf32, #tpu.memory_space<vmem>>, vector<128x1xf32>
    %11 = math.exp %4 : vector<128x128xf32>
    %cst_9 = arith.constant dense<0.000000e+00> : vector<128xf32>
    %12 = vector.multi_reduction <add>, %11, %cst_9 [1] : vector<128x128xf32> to vector<128xf32>
    %13 = vector.shape_cast %12 : vector<128xf32> to vector<128x1xf32>
    %14 = arith.addf %10, %13 : vector<128x1xf32>
    %c0_10 = arith.constant 0 : index
    %c0_11 = arith.constant 0 : index
    %15 = vector.load %arg5[%c0_10, %c0_11] : memref<128x1xf32, #tpu.memory_space<vmem>>, vector<128x1xf32>
    tpu.vector_store %arg5[%c0_10, %c0_11], %14 {strides = array<i32>} : memref<128x1xf32, #tpu.memory_space<vmem>>, vector<128x1xf32>,
    return
  }
  func.func @transform_0(%arg0: i32, %arg1: i32) -> (i32, i32) {
    %c0_i32 = arith.constant 0 : i32
    %c0_i32_0 = arith.constant 0 : i32
    return %arg0, %c0_i32 : i32, i32
  }
  func.func @transform_1(%arg0: i32, %arg1: i32) -> (i32, i32) {
    %c0_i32 = arith.constant 0 : i32
    %c0_i32_0 = arith.constant 0 : i32
    return %arg1, %c0_i32 : i32, i32
  }
  func.func @transform_2(%arg0: i32, %arg1: i32) -> (i32, i32) {
    %c0_i32 = arith.constant 0 : i32
    return %arg0, %arg1 : i32, i32
  }
  func.func @transform_3(%arg0: i32, %arg1: i32) -> (i32, i32) {
    %c0_i32 = arith.constant 0 : i32
    %c0_i32_0 = arith.constant 0 : i32
    return %arg0, %c0_i32 : i32, i32
  }
}

</mosaic_0001>

<llo_original>
// kernel: tpu_custom_call.1
$region0: #{tpu_custom_call.1}
  #allocation0 [shape = 'u32[]', space=smem, size = 0x4, offset = 0x4, fixed_abs, tag = 'smem constant byte address 0x4 - core index']
  #allocation1 [shape = 'u32[72,128]{1,0:T(1,128)}', space=vmem, size = 0x9000, scoped, tag = 'internal scratch']
  %s0 = inlined_call_operand.hbm [shape: bf16[256,128], index: 0, kind: input, shape index: {}]
  %s1 = inlined_call_operand.hbm [shape: bf16[256,128], index: 1, kind: input, shape index: {}]
  %s2 = inlined_call_operand.hbm [shape: bf16[256,256], index: 2, kind: output, shape index: {0}]
  %s3 = inlined_call_operand.vmem [shape: f32[256,1], index: 3, kind: output, shape index: {1}]
  %4 = xla_tuple %s2, %s3
  %s5 = sld [smem:[#allocation0]]
  $region61: #{tpu_custom_call.1} parent=0
    _
  %s7 = ssub.s32 1, %s5
  %s8 = scalar_select 0, %s7, %s5
  $region1: #{tpu_custom_call.1} parent=0
    #allocation2 [shape = 'u8[65536]{0}', space=vmem, size = 0x10000, scoped, tag = 'input window, operand 0']
    #allocation3 [shape = 's32[2]{0}', space=sflag, size = 0x8, scoped, tag = 'scoped memory for tpu_custom_call.1']
    #allocation4 [shape = 's32[2]{0}', space=sflag, size = 0x8, scoped, tag = 'scoped memory for tpu_custom_call.1']
    #allocation5 [shape = 'u8[65536]{0}', space=vmem, size = 0x10000, scoped, tag = 'input window, operand 1']
    #allocation6 [shape = 's32[2]{0}', space=sflag, size = 0x8, scoped, tag = 'scoped memory for tpu_custom_call.1']
    #allocation7 [shape = 'u8[65536]{0}', space=vmem, size = 0x10000, scoped, tag = 'output window, operand 0']
    %9 = vsyncpa [#allocation3], 0
    %s10 = scalar_lea.sflag [#allocation3], 1
    %11 = vsyncpa %s10, 0
    %12 = vsyncpa [#allocation6], 0
    %s13 = scalar_lea.sflag [#allocation6], 1
    %14 = vsyncpa %s13, 0
    %15 = vsyncpa [#allocation4], 0
    %s16 = scalar_lea.sflag [#allocation4], 1
    %17 = vsyncpa %s16, 0
    loop: start=0, step=1, limit=6
    $region2: #{tpu_custom_call.1} parent=1 // loop_pre_header
      _
    $region3: #{tpu_custom_call.1} parent=1 // loop_header
      %s19 = sphi 0, %s23
      %p20 = scmp.ge.s32.totalorder %s19, 6
      %s26 = sphi 0, %s38
      %s27 = sphi 0, %s34
      %s28 = sphi 0, %s26
      %s29 = sphi 0, %s27
      %s30 = sphi 0, %s28
      %s31 = sphi 0, %s29
      %s41 = sphi 0, %s43
      %s44 = sphi 0, %s41
      %s45 = sphi 0, %s44
      %s61 = sphi 0, %s45
      %s67 = sphi 0, %s69
      %s70 = sphi 0, %s67
      %s71 = sphi 0, %s70
      %s87 = sphi 0, %s71
      %s95 = sphi 0, %s97
      %s98 = sphi 0, %s95
      %s99 = sphi 0, %s98
      %s115 = sphi 0, %s99
      %s121 = sphi 0, %s123
      %s124 = sphi 0, %s121
      %s125 = sphi 0, %s124
      %s141 = sphi 0, %s125
    $region4: #{tpu_custom_call.1} parent=1 // loop_header_branch
      %22 = sbr.rel (%p20) target = $region8
    $region5: #{tpu_custom_call.1} parent=1 // loop_body
      %s24 = ssub.s32 %s19, 1
      %s25 = ssub.s32 %s19, 2
      %s32 = sadd.s32 1, %s27
      %p33 = scmp.ge.s32.totalorder %s32, 2
      %s34 = scalar_select %p33, 0, %s32
      %s35 = sadd.s32 1, %s26
      %s36 = scalar_select %p33, %s35, %s26
      %p37 = scmp.ge.s32.totalorder %s36, 2
      %s38 = scalar_select %p37, 0, %s36
      %s39 = ssub.s32 %s26, %s38
      %p40 = scmp.eq.s32.totalorder %s39, 0
      %s42 = sadd.s32 %s41, 1
      %s43 = scalar_select %p40, %s41, %s42
      %p46 = pneg %p40
      %p47 = scmp.eq.s32.totalorder %s19, 3
      %p48 = por %p46, %p47
      %p49 = scmp.ne.s32.totalorder %s41, %s44
      %p50 = scmp.eq.s32.totalorder %s19, 0
      %p51 = por %p49, %p50
      %p52 = scmp.ne.s32.totalorder %s41, %s44
      %p53 = scmp.eq.s32.totalorder %s24, 3
      %p54 = por %p52, %p53
      %p55 = scmp.ne.s32.totalorder %s44, %s45
      %p56 = scmp.eq.s32.totalorder %s24, 0
      %p57 = por %p55, %p56
      %p58 = scmp.ne.s32.totalorder %s44, %s45
      %p59 = scmp.eq.s32.totalorder %s25, 3
      %p60 = por %p58, %p59
      %p62 = scmp.ne.s32.totalorder %s45, %s61
      %p63 = scmp.eq.s32.totalorder %s25, 0
      %p64 = por %p62, %p63
      %s65 = ssub.s32 %s27, %s34
      %p66 = scmp.eq.s32.totalorder %s65, 0
      %s68 = sadd.s32 %s67, 1
      %s69 = scalar_select %p66, %s67, %s68
      %p72 = pneg %p66
      %p73 = scmp.eq.s32.totalorder %s19, 3
      %p74 = por %p72, %p73
      %p75 = scmp.ne.s32.totalorder %s67, %s70
      %p76 = scmp.eq.s32.totalorder %s19, 0
      %p77 = por %p75, %p76
      %p78 = scmp.ne.s32.totalorder %s67, %s70
      %p79 = scmp.eq.s32.totalorder %s24, 3
      %p80 = por %p78, %p79
      %p81 = scmp.ne.s32.totalorder %s70, %s71
      %p82 = scmp.eq.s32.totalorder %s24, 0
      %p83 = por %p81, %p82
      %p84 = scmp.ne.s32.totalorder %s70, %s71
      %p85 = scmp.eq.s32.totalorder %s25, 3
      %p86 = por %p84, %p85
      %p88 = scmp.ne.s32.totalorder %s71, %s87
      %p89 = scmp.eq.s32.totalorder %s25, 0
      %p90 = por %p88, %p89
      %s91 = ssub.s32 %s26, %s38
      %s92 = ssub.s32 %s27, %s34
      %s93 = sor.u32 %s91, %s92
      %p94 = scmp.eq.s32.totalorder %s93, 0
      %s96 = sadd.s32 %s95, 1
      %s97 = scalar_select %p94, %s95, %s96
      %p100 = pneg %p94
      %p101 = scmp.eq.s32.totalorder %s19, 3
      %p102 = por %p100, %p101
      %p103 = scmp.ne.s32.totalorder %s95, %s98
      %p104 = scmp.eq.s32.totalorder %s19, 0
      %p105 = por %p103, %p104
      %p106 = scmp.ne.s32.totalorder %s95, %s98
      %p107 = scmp.eq.s32.totalorder %s24, 3
      %p108 = por %p106, %p107
      %p109 = scmp.ne.s32.totalorder %s98, %s99
      %p110 = scmp.eq.s32.totalorder %s24, 0
      %p111 = por %p109, %p110
      %p112 = scmp.ne.s32.totalorder %s98, %s99
      %p113 = scmp.eq.s32.totalorder %s25, 3
      %p114 = por %p112, %p113
      %p116 = scmp.ne.s32.totalorder %s99, %s115
      %p117 = scmp.eq.s32.totalorder %s25, 0
      %p118 = por %p116, %p117
      %s119 = ssub.s32 %s26, %s38
      %p120 = scmp.eq.s32.totalorder %s119, 0
      %s122 = sadd.s32 %s121, 1
      %s123 = scalar_select %p120, %s121, %s122
      %p126 = pneg %p120
      %p127 = scmp.eq.s32.totalorder %s19, 3
      %p128 = por %p126, %p127
      %p129 = scmp.ne.s32.totalorder %s121, %s124
      %p130 = scmp.eq.s32.totalorder %s19, 0
      %p131 = por %p129, %p130
      %p132 = scmp.ne.s32.totalorder %s121, %s124
      %p133 = scmp.eq.s32.totalorder %s24, 3
      %p134 = por %p132, %p133
      %p135 = scmp.ne.s32.totalorder %s124, %s125
      %p136 = scmp.eq.s32.totalorder %s24, 0
      %p137 = por %p135, %p136
      %p138 = scmp.ne.s32.totalorder %s124, %s125
      %p139 = scmp.eq.s32.totalorder %s25, 3
      %p140 = por %p138, %p139
      %p142 = scmp.ne.s32.totalorder %s125, %s141
      %p143 = scmp.eq.s32.totalorder %s25, 0
      %p144 = por %p142, %p143
      %p145 = scmp.le.s32.totalorder 1, %s19
      %p146 = scmp.lt.s32.totalorder %s19, 5
      %p147 = pnand %p145, %p146
      %p148 = pneg %p147
      // Predicated region
      $region9: #{tpu_custom_call.1} parent=5 // pred_check
        _
      $region10: #{tpu_custom_call.1} parent=5 // pred_check_branch
        %150 = sbr.rel (%p147) target = $region12
      $region11: #{tpu_custom_call.1} parent=5 // pred_region
        %s151 = ssub.s32 %s19, 1
      $region12: #{tpu_custom_call.1} parent=5 // pred_fallthru
        _
      %p152 = scmp.lt.s32.totalorder %s19, 4
      // Predicated region
      $region13: #{tpu_custom_call.1} parent=5 // pred_check
        %p153 = pneg %p152
      $region14: #{tpu_custom_call.1} parent=5 // pred_check_branch
        %155 = sbr.rel (%p153) target = $region16
      $region15: #{tpu_custom_call.1} parent=5 // pred_region
        // Predicated region
        $region17: #{tpu_custom_call.1} parent=15 // pred_check
          %p156 = pneg %p51
        $region18: #{tpu_custom_call.1} parent=15 // pred_check_branch
          %158 = sbr.rel (%p156) target = $region20
        $region19: #{tpu_custom_call.1} parent=15 // pred_region
          %s159 = sand.u32 %s41, 1
          %s160 = scalar_lea.sflag [#allocation3], %s159
          %s161 = sand.u32 %s41, 1
          %s162 = smul.addr %s161, 64
          %s163 = scalar_lea.vmem [#allocation2], %s162
          %s164 = smul.u32 16, %s26
          %166 = vsyncadd %s160, 0
          %s167 = smul.addr %s164, 4
          %s168 = scalar_lea.hbm %s0, %s167
          %s169 = sshll.u32 %s168, 4
          %s170 = int_to_ptr.hbm [resolvable:$true] %s169
          %s171 = sshll.u32 %s163, 4
          %s172 = int_to_ptr.vmem [resolvable:$true] %s171
          %177 = dma.hbm_to_vmem [thread:$0]  %s170, 1024, %s172, %s160, 64, 64, 4
        $region20: #{tpu_custom_call.1} parent=15 // pred_fallthru
          _
        // Predicated region
        $region21: #{tpu_custom_call.1} parent=15 // pred_check
          %p178 = pneg %p77
        $region22: #{tpu_custom_call.1} parent=15 // pred_check_branch
          %180 = sbr.rel (%p178) target = $region24
        $region23: #{tpu_custom_call.1} parent=15 // pred_region
          %s181 = sand.u32 %s67, 1
          %s182 = scalar_lea.sflag [#allocation6], %s181
          %s183 = sand.u32 %s67, 1
          %s184 = smul.addr %s183, 64
          %s185 = scalar_lea.vmem [#allocation5], %s184
          %s186 = smul.u32 16, %s27
          %188 = vsyncadd %s182, 0
          %s189 = smul.addr %s186, 4
          %s190 = scalar_lea.hbm %s1, %s189
          %s191 = sshll.u32 %s190, 4
          %s192 = int_to_ptr.hbm [resolvable:$true] %s191
          %s193 = sshll.u32 %s185, 4
          %s194 = int_to_ptr.vmem [resolvable:$true] %s193
          %199 = dma.hbm_to_vmem [thread:$0]  %s192, 1024, %s194, %s182, 64, 64, 4
        $region24: #{tpu_custom_call.1} parent=15 // pred_fallthru
          _
      $region16: #{tpu_custom_call.1} parent=5 // pred_fallthru
        _
      %p200 = scmp.le.s32.totalorder 1, %s19
      %p201 = scmp.lt.s32.totalorder %s19, 5
      %p202 = pnand %p200, %p201
      %p203 = pneg %p202
      // Predicated region
      $region25: #{tpu_custom_call.1} parent=5 // pred_check
        _
      $region26: #{tpu_custom_call.1} parent=5 // pred_check_branch
        %205 = sbr.rel (%p202) target = $region28
      $region27: #{tpu_custom_call.1} parent=5 // pred_region
        %s206 = ssub.s32 %s19, 1
        %s207 = sand.u32 %s44, 1
        %s208 = scalar_lea.sflag [#allocation3], %s207
        %s209 = sand.u32 %s44, 1
        %s210 = smul.addr %s209, 64
        %s211 = scalar_lea.vmem [#allocation2], %s210
        // Predicated region
        $region29: #{tpu_custom_call.1} parent=27 // pred_check
          %p212 = pneg %p57
        $region30: #{tpu_custom_call.1} parent=27 // pred_check_branch
          %214 = sbr.rel (%p212) target = $region32
        $region31: #{tpu_custom_call.1} parent=27 // pred_region
          %216 = dma.done %s208, 1024
        $region32: #{tpu_custom_call.1} parent=27 // pred_fallthru
          _
        %s217 = sand.u32 %s70, 1
        %s218 = scalar_lea.sflag [#allocation6], %s217
        %s219 = sand.u32 %s70, 1
        %s220 = smul.addr %s219, 64
        %s221 = scalar_lea.vmem [#allocation5], %s220
        // Predicated region
        $region33: #{tpu_custom_call.1} parent=27 // pred_check
          %p222 = pneg %p83
        $region34: #{tpu_custom_call.1} parent=27 // pred_check_branch
          %224 = sbr.rel (%p222) target = $region36
        $region35: #{tpu_custom_call.1} parent=27 // pred_region
          %226 = dma.done %s218, 1024
        $region36: #{tpu_custom_call.1} parent=27 // pred_fallthru
          _
        %s227 = sand.u32 %s44, 1
        %s228 = scalar_lea.sflag [#allocation3], %s227
        %s229 = sand.u32 %s44, 1
        %s230 = smul.addr %s229, 64
        %s231 = scalar_lea.vmem [#allocation2], %s230
        %p232 = pneg %p57
        %p233 = pneg %p54
        %s234 = sand.u32 %s70, 1
        %s235 = scalar_lea.sflag [#allocation6], %s234
        %s236 = sand.u32 %s70, 1
        %s237 = smul.addr %s236, 64
        %s238 = scalar_lea.vmem [#allocation5], %s237
        %p239 = pneg %p83
        %p240 = pneg %p80
        %p241 = pneg %p111
        %p242 = pneg %p108
        %s243 = sand.u32 %s98, 1
        %s244 = scalar_lea.sflag [#allocation4], %s243
        %s245 = sand.u32 %s98, 1
        %s246 = smul.addr %s245, 64
        %s247 = scalar_lea.vmem [#allocation7], %s246
        %p248 = pneg %p137
        %p249 = pneg %p134
        %s250 = smul.u32 16, %s28
        %p251 = scmp.lt.s32.totalorder %s250, 31
        %s252 = scalar_select %p251, %s250, 31
        %s253 = smul.addr %s252, 8
        %s254 = scalar_lea.vmem %s3, %s253
        %s255 = smul.u32 16, %s28
        %s256 = smul.u32 16, %s29
        %s257 = smul.u32 16, %s28
        %s258 = smul.u32 16, %s28
        %p259 = scmp.lt.s32.totalorder %s258, 31
        %s260 = scalar_select %p259, %s258, 31
        %s261 = smul.addr %s260, 8
        %s262 = scalar_lea.vmem %s3, %s261
        %s263 = smul.u32 16, %s28
        %v264 = vld [vmem:[%s211] sm:$0xf]
        %v265 = vld [vmem:[%s211 + $0x4] sm:$0xf]
        %v266 = vld [vmem:[%s211 + $0x8] sm:$0xf]
        %v267 = vld [vmem:[%s211 + $0xc] sm:$0xf]
        %v268 = vld [vmem:[%s211 + $0x10] sm:$0xf]
        %v269 = vld [vmem:[%s211 + $0x14] sm:$0xf]
        %v270 = vld [vmem:[%s211 + $0x18] sm:$0xf]
        %v271 = vld [vmem:[%s211 + $0x1c] sm:$0xf]
        %v272 = vld [vmem:[%s211 + $0x20] sm:$0xf]
        %v273 = vld [vmem:[%s211 + $0x24] sm:$0xf]
        %v274 = vld [vmem:[%s211 + $0x28] sm:$0xf]
        %v275 = vld [vmem:[%s211 + $0x2c] sm:$0xf]
        %v276 = vld [vmem:[%s211 + $0x30] sm:$0xf]
        %v277 = vld [vmem:[%s211 + $0x34] sm:$0xf]
        %v278 = vld [vmem:[%s211 + $0x38] sm:$0xf]
        %v279 = vld [vmem:[%s211 + $0x3c] sm:$0xf]
        %v280 = vld [vmem:[%s221] sm:$0xf]
        %v281 = vld [vmem:[%s221 + $0x4] sm:$0xf]
        %v282 = vld [vmem:[%s221 + $0x8] sm:$0xf]
        %v283 = vld [vmem:[%s221 + $0xc] sm:$0xf]
        %v284 = vld [vmem:[%s221 + $0x10] sm:$0xf]
        %v285 = vld [vmem:[%s221 + $0x14] sm:$0xf]
        %v286 = vld [vmem:[%s221 + $0x18] sm:$0xf]
        %v287 = vld [vmem:[%s221 + $0x1c] sm:$0xf]
        %v288 = vld [vmem:[%s221 + $0x20] sm:$0xf]
        %v289 = vld [vmem:[%s221 + $0x24] sm:$0xf]
        %v290 = vld [vmem:[%s221 + $0x28] sm:$0xf]
        %v291 = vld [vmem:[%s221 + $0x2c] sm:$0xf]
        %v292 = vld [vmem:[%s221 + $0x30] sm:$0xf]
        %v293 = vld [vmem:[%s221 + $0x34] sm:$0xf]
        %v294 = vld [vmem:[%s221 + $0x38] sm:$0xf]
        %v295 = vld [vmem:[%s221 + $0x3c] sm:$0xf]
        %v312 = vunpack.c.l.b16 %v264
        %v313 = vunpack.c.l.b16 %v265
        %v314 = vunpack.c.l.b16 %v266
        %v315 = vunpack.c.l.b16 %v267
        %v316 = vunpack.c.l.b16 %v268
        %v317 = vunpack.c.l.b16 %v269
        %v318 = vunpack.c.l.b16 %v270
        %v319 = vunpack.c.l.b16 %v271
        %v320 = vunpack.c.l.b16 %v272
        %v321 = vunpack.c.l.b16 %v273
        %v322 = vunpack.c.l.b16 %v274
        %v323 = vunpack.c.l.b16 %v275
        %v324 = vunpack.c.l.b16 %v276
        %v325 = vunpack.c.l.b16 %v277
        %v326 = vunpack.c.l.b16 %v278
        %v327 = vunpack.c.l.b16 %v279
        %v328 = vpack.c.b16 %v313, %v312
        %v329 = vpack.c.b16 %v315, %v314
        %v330 = vpack.c.b16 %v317, %v316
        %v331 = vpack.c.b16 %v319, %v318
        %v332 = vpack.c.b16 %v321, %v320
        %v333 = vpack.c.b16 %v323, %v322
        %v334 = vpack.c.b16 %v325, %v324
        %v335 = vpack.c.b16 %v327, %v326
        %v360 = vunpack.c.l.b16 %v280
        %v361 = vunpack.c.l.b16 %v281
        %v362 = vunpack.c.l.b16 %v282
        %v363 = vunpack.c.l.b16 %v283
        %v364 = vunpack.c.l.b16 %v284
        %v365 = vunpack.c.l.b16 %v285
        %v366 = vunpack.c.l.b16 %v286
        %v367 = vunpack.c.l.b16 %v287
        %v368 = vunpack.c.l.b16 %v288
        %v369 = vunpack.c.l.b16 %v289
        %v370 = vunpack.c.l.b16 %v290
        %v371 = vunpack.c.l.b16 %v291
        %v372 = vunpack.c.l.b16 %v292
        %v373 = vunpack.c.l.b16 %v293
        %v374 = vunpack.c.l.b16 %v294
        %v375 = vunpack.c.l.b16 %v295
        %v376 = vpack.c.b16 %v361, %v360
        %v377 = vpack.c.b16 %v363, %v362
        %v378 = vpack.c.b16 %v365, %v364
        %v379 = vpack.c.b16 %v367, %v366
        %v380 = vpack.c.b16 %v369, %v368
        %v381 = vpack.c.b16 %v371, %v370
        %v382 = vpack.c.b16 %v373, %v372
        %v383 = vpack.c.b16 %v375, %v374
        %392 = vmatpush.bf16.xpose.msra.mxu0 %v383
        %393 = vmatpush.bf16.xpose.msra.mxu0 %v382
        %394 = vmatpush.bf16.xpose.msra.mxu0 %v381
        %395 = vmatpush.bf16.xpose.msra.mxu0 %v380
        %396 = vmatpush.bf16.xpose.msra.mxu0 %v379
        %397 = vmatpush.bf16.xpose.msra.mxu0 %v378
        %398 = vmatpush.bf16.xpose.msra.mxu0 %v377
        %399 = vmatpush.bf16.xpose.msra.mxu0 %v376
        %400 = vmatmul.bf16.gmra.mxu0 %v328
        %v401 = vpop.f32.mrf.mxu0
        %v402 = vadd.f32 0.0, %v401
        %v403 = vpop.f32.mrf.mxu0
        %v404 = vadd.f32 0.0, %v403
        %405 = vmatmul.bf16.gmra.mxu0 %v329
        %v406 = vpop.f32.mrf.mxu0
        %v407 = vadd.f32 0.0, %v406
        %v408 = vpop.f32.mrf.mxu0
        %v409 = vadd.f32 0.0, %v408
        %410 = vmatmul.bf16.gmra.mxu0 %v330
        %v411 = vpop.f32.mrf.mxu0
        %v412 = vadd.f32 0.0, %v411
        %v413 = vpop.f32.mrf.mxu0
        %v414 = vadd.f32 0.0, %v413
        %415 = vmatmul.bf16.gmra.mxu0 %v331
        %v416 = vpop.f32.mrf.mxu0
        %v417 = vadd.f32 0.0, %v416
        %v418 = vpop.f32.mrf.mxu0
        %v419 = vadd.f32 0.0, %v418
        %420 = vmatmul.bf16.gmra.mxu0 %v332
        %v421 = vpop.f32.mrf.mxu0
        %v422 = vadd.f32 0.0, %v421
        %v423 = vpop.f32.mrf.mxu0
        %v424 = vadd.f32 0.0, %v423
        %425 = vmatmul.bf16.gmra.mxu0 %v333
        %v426 = vpop.f32.mrf.mxu0
        %v427 = vadd.f32 0.0, %v426
        %v428 = vpop.f32.mrf.mxu0
        %v429 = vadd.f32 0.0, %v428
        %430 = vmatmul.bf16.gmra.mxu0 %v334
        %v431 = vpop.f32.mrf.mxu0
        %v432 = vadd.f32 0.0, %v431
        %v433 = vpop.f32.mrf.mxu0
        %v434 = vadd.f32 0.0, %v433
        %435 = vmatmul.bf16.gmra.mxu0 %v335
        %v436 = vpop.f32.mrf.mxu0
        %v437 = vadd.f32 0.0, %v436
        %v438 = vpop.f32.mrf.mxu0
        %v439 = vadd.f32 0.0, %v438
        %440 = vdwg.mxu0
        %v441 = vmul.f32 %v402, 2.0
        %v442 = vmul.f32 %v404, 2.0
        %v443 = vmul.f32 %v407, 2.0
        %v444 = vmul.f32 %v409, 2.0
        %v445 = vmul.f32 %v412, 2.0
        %v446 = vmul.f32 %v414, 2.0
        %v447 = vmul.f32 %v417, 2.0
        %v448 = vmul.f32 %v419, 2.0
        %v449 = vmul.f32 %v422, 2.0
        %v450 = vmul.f32 %v424, 2.0
        %v451 = vmul.f32 %v427, 2.0
        %v452 = vmul.f32 %v429, 2.0
        %v453 = vmul.f32 %v432, 2.0
        %v454 = vmul.f32 %v434, 2.0
        %v455 = vmul.f32 %v437, 2.0
        %v456 = vmul.f32 %v439, 2.0
        %v457 = vpack.c.bf16 %v441, %v441
        %v458 = vpack.c.bf16 %v442, %v442
        %v459 = vpack.c.bf16 %v443, %v443
        %v460 = vpack.c.bf16 %v444, %v444
        %v461 = vpack.c.bf16 %v445, %v445
        %v462 = vpack.c.bf16 %v446, %v446
        %v463 = vpack.c.bf16 %v447, %v447
        %v464 = vpack.c.bf16 %v448, %v448
        %v465 = vpack.c.bf16 %v449, %v449
        %v466 = vpack.c.bf16 %v450, %v450
        %v467 = vpack.c.bf16 %v451, %v451
        %v468 = vpack.c.bf16 %v452, %v452
        %v469 = vpack.c.bf16 %v453, %v453
        %v470 = vpack.c.bf16 %v454, %v454
        %v471 = vpack.c.bf16 %v455, %v455
        %v472 = vpack.c.bf16 %v456, %v456
        %473 = vst [vmem:[%s247] sm:$0xf] %v457
        %474 = vst [vmem:[%s247 + $0x4] sm:$0xf] %v458
        %475 = vst [vmem:[%s247 + $0x8] sm:$0xf] %v459
        %476 = vst [vmem:[%s247 + $0xc] sm:$0xf] %v460
        %477 = vst [vmem:[%s247 + $0x10] sm:$0xf] %v461
        %478 = vst [vmem:[%s247 + $0x14] sm:$0xf] %v462
        %479 = vst [vmem:[%s247 + $0x18] sm:$0xf] %v463
        %480 = vst [vmem:[%s247 + $0x1c] sm:$0xf] %v464
        %481 = vst [vmem:[%s247 + $0x20] sm:$0xf] %v465
        %482 = vst [vmem:[%s247 + $0x24] sm:$0xf] %v466
        %483 = vst [vmem:[%s247 + $0x28] sm:$0xf] %v467
        %484 = vst [vmem:[%s247 + $0x2c] sm:$0xf] %v468
        %485 = vst [vmem:[%s247 + $0x30] sm:$0xf] %v469
        %486 = vst [vmem:[%s247 + $0x34] sm:$0xf] %v470
        %487 = vst [vmem:[%s247 + $0x38] sm:$0xf] %v471
        %488 = vst [vmem:[%s247 + $0x3c] sm:$0xf] %v472
        %p489 = scmp.eq.s32.totalorder %s29, 0
        // Predicated region
        $region37: #{tpu_custom_call.1} parent=27 // pred_check
          %p490 = pneg %p489
        $region38: #{tpu_custom_call.1} parent=27 // pred_check_branch
          %492 = sbr.rel (%p490) target = $region40
        $region39: #{tpu_custom_call.1} parent=27 // pred_region
          %vm493 = vcmask 7168
          %494 = vst.msk [vmem:[%s262] sm:$0xff] %vm493, 0.0
          %495 = vst.msk [vmem:[%s262 + $0x8] sm:$0xff] %vm493, 0.0
          %496 = vst.msk [vmem:[%s262 + $0x10] sm:$0xff] %vm493, 0.0
          %497 = vst.msk [vmem:[%s262 + $0x18] sm:$0xff] %vm493, 0.0
          %498 = vst.msk [vmem:[%s262 + $0x20] sm:$0xff] %vm493, 0.0
          %499 = vst.msk [vmem:[%s262 + $0x28] sm:$0xff] %vm493, 0.0
          %500 = vst.msk [vmem:[%s262 + $0x30] sm:$0xff] %vm493, 0.0
          %501 = vst.msk [vmem:[%s262 + $0x38] sm:$0xff] %vm493, 0.0
          %502 = vst.msk [vmem:[%s262 + $0x40] sm:$0xff] %vm493, 0.0
          %503 = vst.msk [vmem:[%s262 + $0x48] sm:$0xff] %vm493, 0.0
          %504 = vst.msk [vmem:[%s262 + $0x50] sm:$0xff] %vm493, 0.0
          %505 = vst.msk [vmem:[%s262 + $0x58] sm:$0xff] %vm493, 0.0
          %506 = vst.msk [vmem:[%s262 + $0x60] sm:$0xff] %vm493, 0.0
          %507 = vst.msk [vmem:[%s262 + $0x68] sm:$0xff] %vm493, 0.0
          %508 = vst.msk [vmem:[%s262 + $0x70] sm:$0xff] %vm493, 0.0
          %509 = vst.msk [vmem:[%s262 + $0x78] sm:$0xff] %vm493, 0.0
        $region40: #{tpu_custom_call.1} parent=27 // pred_fallthru
          _
        %v510 = vld [vmem:[%s262] sm:$0xff]
        %v511 = vld [vmem:[%s262 + $0x8] sm:$0xff]
        %v512 = vld [vmem:[%s262 + $0x10] sm:$0xff]
        %v513 = vld [vmem:[%s262 + $0x18] sm:$0xff]
        %v514 = vld [vmem:[%s262 + $0x20] sm:$0xff]
        %v515 = vld [vmem:[%s262 + $0x28] sm:$0xff]
        %v516 = vld [vmem:[%s262 + $0x30] sm:$0xff]
        %v517 = vld [vmem:[%s262 + $0x38] sm:$0xff]
        %v518 = vld [vmem:[%s262 + $0x40] sm:$0xff]
        %v519 = vld [vmem:[%s262 + $0x48] sm:$0xff]
        %v520 = vld [vmem:[%s262 + $0x50] sm:$0xff]
        %v521 = vld [vmem:[%s262 + $0x58] sm:$0xff]
        %v522 = vld [vmem:[%s262 + $0x60] sm:$0xff]
        %v523 = vld [vmem:[%s262 + $0x68] sm:$0xff]
        %v524 = vld [vmem:[%s262 + $0x70] sm:$0xff]
        %v525 = vld [vmem:[%s262 + $0x78] sm:$0xff]
        %v526 = vmul.f32 %v441, 1.442695
        %v527 = vpow.pop %v526
        %v528 = vmul.f32 %v442, 1.442695
        %v529 = vpow.pop %v528
        %v530 = vmul.f32 %v443, 1.442695
        %v531 = vpow.pop %v530
        %v532 = vmul.f32 %v444, 1.442695
        %v533 = vpow.pop %v532
        %v534 = vmul.f32 %v445, 1.442695
        %v535 = vpow.pop %v534
        %v536 = vmul.f32 %v446, 1.442695
        %v537 = vpow.pop %v536
        %v538 = vmul.f32 %v447, 1.442695
        %v539 = vpow.pop %v538
        %v540 = vmul.f32 %v448, 1.442695
        %v541 = vpow.pop %v540
        %v542 = vmul.f32 %v449, 1.442695
        %v543 = vpow.pop %v542
        %v544 = vmul.f32 %v450, 1.442695
        %v545 = vpow.pop %v544
        %v546 = vmul.f32 %v451, 1.442695
        %v547 = vpow.pop %v546
        %v548 = vmul.f32 %v452, 1.442695
        %v549 = vpow.pop %v548
        %v550 = vmul.f32 %v453, 1.442695
        %v551 = vpow.pop %v550
        %v552 = vmul.f32 %v454, 1.442695
        %v553 = vpow.pop %v552
        %v554 = vmul.f32 %v455, 1.442695
        %v555 = vpow.pop %v554
        %v556 = vmul.f32 %v456, 1.442695
        %v557 = vpow.pop %v556
        %558 = vadd.xlane.f32.xlu0 %v527
        %v559 = vpop.xlane.xlu0 %558
        %560 = vadd.xlane.f32.xlu0 %v529
        %v561 = vpop.xlane.xlu0 %560
        %562 = vadd.xlane.f32.xlu0 %v531
        %v563 = vpop.xlane.xlu0 %562
        %564 = vadd.xlane.f32.xlu0 %v533
        %v565 = vpop.xlane.xlu0 %564
        %566 = vadd.xlane.f32.xlu0 %v535
        %v567 = vpop.xlane.xlu0 %566
        %568 = vadd.xlane.f32.xlu0 %v537
        %v569 = vpop.xlane.xlu0 %568
        %570 = vadd.xlane.f32.xlu0 %v539
        %v571 = vpop.xlane.xlu0 %570
        %572 = vadd.xlane.f32.xlu0 %v541
        %v573 = vpop.xlane.xlu0 %572
        %574 = vadd.xlane.f32.xlu0 %v543
        %v575 = vpop.xlane.xlu0 %574
        %576 = vadd.xlane.f32.xlu0 %v545
        %v577 = vpop.xlane.xlu0 %576
        %578 = vadd.xlane.f32.xlu0 %v547
        %v579 = vpop.xlane.xlu0 %578
        %580 = vadd.xlane.f32.xlu0 %v549
        %v581 = vpop.xlane.xlu0 %580
        %582 = vadd.xlane.f32.xlu0 %v551
        %v583 = vpop.xlane.xlu0 %582
        %584 = vadd.xlane.f32.xlu0 %v553
        %v585 = vpop.xlane.xlu0 %584
        %586 = vadd.xlane.f32.xlu0 %v555
        %v587 = vpop.xlane.xlu0 %586
        %588 = vadd.xlane.f32.xlu0 %v557
        %v589 = vpop.xlane.xlu0 %588
        %v590 = vadd.f32 %v510, %v559
        %v591 = vadd.f32 %v511, %v561
        %v592 = vadd.f32 %v512, %v563
        %v593 = vadd.f32 %v513, %v565
        %v594 = vadd.f32 %v514, %v567
        %v595 = vadd.f32 %v515, %v569
        %v596 = vadd.f32 %v516, %v571
        %v597 = vadd.f32 %v517, %v573
        %v598 = vadd.f32 %v518, %v575
        %v599 = vadd.f32 %v519, %v577
        %v600 = vadd.f32 %v520, %v579
        %v601 = vadd.f32 %v521, %v581
        %v602 = vadd.f32 %v522, %v583
        %v603 = vadd.f32 %v523, %v585
        %v604 = vadd.f32 %v524, %v587
        %v605 = vadd.f32 %v525, %v589
        %vm606 = vcmask 7168
        %607 = vst.msk [vmem:[%s262] sm:$0xff] %vm606, %v590
        %608 = vst.msk [vmem:[%s262 + $0x8] sm:$0xff] %vm606, %v591
        %609 = vst.msk [vmem:[%s262 + $0x10] sm:$0xff] %vm606, %v592
        %610 = vst.msk [vmem:[%s262 + $0x18] sm:$0xff] %vm606, %v593
        %611 = vst.msk [vmem:[%s262 + $0x20] sm:$0xff] %vm606, %v594
        %612 = vst.msk [vmem:[%s262 + $0x28] sm:$0xff] %vm606, %v595
        %613 = vst.msk [vmem:[%s262 + $0x30] sm:$0xff] %vm606, %v596
        %614 = vst.msk [vmem:[%s262 + $0x38] sm:$0xff] %vm606, %v597
        %615 = vst.msk [vmem:[%s262 + $0x40] sm:$0xff] %vm606, %v598
        %616 = vst.msk [vmem:[%s262 + $0x48] sm:$0xff] %vm606, %v599
        %617 = vst.msk [vmem:[%s262 + $0x50] sm:$0xff] %vm606, %v600
        %618 = vst.msk [vmem:[%s262 + $0x58] sm:$0xff] %vm606, %v601
        %619 = vst.msk [vmem:[%s262 + $0x60] sm:$0xff] %vm606, %v602
        %620 = vst.msk [vmem:[%s262 + $0x68] sm:$0xff] %vm606, %v603
        %621 = vst.msk [vmem:[%s262 + $0x70] sm:$0xff] %vm606, %v604
        %622 = vst.msk [vmem:[%s262 + $0x78] sm:$0xff] %vm606, %v605
        %s623 = sand.u32 %s98, 1
        %s624 = scalar_lea.sflag [#allocation4], %s623
        %s625 = sand.u32 %s98, 1
        %s626 = smul.addr %s625, 64
        %s627 = scalar_lea.vmem [#allocation7], %s626
        %s628 = smul.u32 16, %s28
        %p629 = scmp.lt.s32.totalorder %s628, 31
        %s630 = scalar_select %p629, %s628, 31
        %s631 = smul.addr %s630, 8
        %s632 = scalar_lea.vmem %s3, %s631
        // Predicated region
        $region41: #{tpu_custom_call.1} parent=27 // pred_check
          %p633 = pneg %p108
        $region42: #{tpu_custom_call.1} parent=27 // pred_check_branch
          %635 = sbr.rel (%p633) target = $region44
        $region43: #{tpu_custom_call.1} parent=27 // pred_region
          %s636 = smul.u32 16, %s28
          %638 = vsyncadd %s624, 0
          %s639 = smul.addr %s636, 2
          %s640 = sadd.s32 %s29, %s639
          %s641 = smul.addr %s640, 4
          %s642 = scalar_lea.hbm %s2, %s641
          %s643 = sshll.u32 %s627, 4
          %s644 = int_to_ptr.vmem [resolvable:$true] %s643
          %s645 = sshll.u32 %s642, 4
          %s646 = int_to_ptr.hbm [resolvable:$true] %s645
          %651 = dma.vmem_to_hbm [thread:$0]  %s644, 1024, %s646, %s624, 64, 128, 4
        $region44: #{tpu_custom_call.1} parent=27 // pred_fallthru
          _
        // Predicated region
        $region45: #{tpu_custom_call.1} parent=27 // pred_check
          %p652 = pneg %p134
        $region46: #{tpu_custom_call.1} parent=27 // pred_check_branch
          %654 = sbr.rel (%p652) target = $region48
        $region47: #{tpu_custom_call.1} parent=27 // pred_region
          %s655 = smul.u32 16, %s28
        $region48: #{tpu_custom_call.1} parent=27 // pred_fallthru
          _
      $region28: #{tpu_custom_call.1} parent=5 // pred_fallthru
        _
      %p656 = scmp.le.s32.totalorder 2, %s19
      // Predicated region
      $region49: #{tpu_custom_call.1} parent=5 // pred_check
        %p657 = pneg %p656
      $region50: #{tpu_custom_call.1} parent=5 // pred_check_branch
        %659 = sbr.rel (%p657) target = $region52
      $region51: #{tpu_custom_call.1} parent=5 // pred_region
        %s660 = ssub.s32 %s19, 2
        // Predicated region
        $region53: #{tpu_custom_call.1} parent=51 // pred_check
          %p661 = pneg %p114
        $region54: #{tpu_custom_call.1} parent=51 // pred_check_branch
          %663 = sbr.rel (%p661) target = $region56
        $region55: #{tpu_custom_call.1} parent=51 // pred_region
          %s664 = sand.u32 %s99, 1
          %s665 = scalar_lea.sflag [#allocation4], %s664
          %s666 = sand.u32 %s99, 1
          %s667 = smul.addr %s666, 64
          %s668 = scalar_lea.vmem [#allocation7], %s667
          %670 = dma.done %s665, 1024
        $region56: #{tpu_custom_call.1} parent=51 // pred_fallthru
          _
        // Predicated region
        $region57: #{tpu_custom_call.1} parent=51 // pred_check
          %p671 = pneg %p140
        $region58: #{tpu_custom_call.1} parent=51 // pred_check_branch
          %673 = sbr.rel (%p671) target = $region60
        $region59: #{tpu_custom_call.1} parent=51 // pred_region
          %s674 = smul.u32 16, %s30
          %p675 = scmp.lt.s32.totalorder %s674, 31
          %s676 = scalar_select %p675, %s674, 31
          %s677 = smul.addr %s676, 8
          %s678 = scalar_lea.vmem %s3, %s677
        $region60: #{tpu_custom_call.1} parent=51 // pred_fallthru
          _
      $region52: #{tpu_custom_call.1} parent=5 // pred_fallthru
        _
    $region6: #{tpu_custom_call.1} parent=1 // loop_footer
      %s23 = sadd.s32 1, %s19
    $region7: #{tpu_custom_call.1} parent=1 // loop_footer_branch
      %18 = sbr.rel target = $region3
    $region8: #{tpu_custom_call.1} parent=1 // loop_exit
      _
    %679 = vsyncpa [#allocation3], 1
    %s680 = scalar_lea.sflag [#allocation3], 1
    %681 = vsyncpa %s680, 1
    %682 = vsyncpa [#allocation6], 1
    %s683 = scalar_lea.sflag [#allocation6], 1
    %684 = vsyncpa %s683, 1
    %685 = vsyncpa [#allocation4], 1
    %s686 = scalar_lea.sflag [#allocation4], 1
    %687 = vsyncpa %s686, 1

</llo_original>
